<compile_context>
chip_gen: v6e
topology: v6e:2x2x1
jax: 0.10.0
libtpu: 0.0.40
codegen_flags: <defaults>
</compile_context>

<pallas_src>
import jax
import jax.numpy as jnp
from jax.experimental import pallas as pl
from jax.experimental.pallas import tpu as pltpu

NUM_REPEATS = 8


def cat_mm_kernel(x_ref, y_ref, o_ref):
    # One MXU pass on the original (M, K) x (K, N) operands.
    v = jnp.dot(x_ref[...], y_ref[...], preferred_element_type=jnp.float32)
    # Replicate the small (M, N) result along the lane axis -> (M, 8*N) and
    # write the whole lane-dense block with a single unmasked store.
    o_ref[...] = jnp.tile(v, (1, NUM_REPEATS)).astype(o_ref.dtype)


def cat_mm(x, y):
    M, K = x.shape
    K2, N = y.shape
    assert K == K2, "inner dimensions must match for mm"
    out_shape = jax.ShapeDtypeStruct((M, NUM_REPEATS * N), x.dtype)
    bytes_accessed = (
        x.size * x.dtype.itemsize
        + y.size * y.dtype.itemsize
        + M * NUM_REPEATS * N * x.dtype.itemsize
    )
    # Gridless call: whole operands resident in VMEM, no pipelining overhead.
    # The op is launch/DMA-latency bound at these sizes; the cost estimate lets
    # the XLA scheduler overlap it with neighboring HLO.
    return pl.pallas_call(
        cat_mm_kernel,
        out_shape=out_shape,
        in_specs=[
            pl.BlockSpec(memory_space=pltpu.MemorySpace.VMEM),
            pl.BlockSpec(memory_space=pltpu.MemorySpace.VMEM),
        ],
        out_specs=pl.BlockSpec(memory_space=pltpu.MemorySpace.VMEM),
        cost_estimate=pl.CostEstimate(
            flops=2 * M * K * N,
            transcendentals=0,
            bytes_accessed=bytes_accessed,
        ),
    )(x, y)


def cat_mm_ref(x, y):
    v = x @ y
    return jnp.concatenate([v] * NUM_REPEATS, axis=1)


if __name__ == "__main__":
    key = jax.random.PRNGKey(0)
    kx, ky = jax.random.split(key)
    # Small mm-compatible shapes: x (M, K), y (K, N); output is (M, 8*N)=(8,128),
    # keeping the output last dim a multiple of 128 (unmasked stores on v5e).
    M, K, N = 8, 32, 16
    x = jax.random.normal(kx, (M, K), dtype=jnp.float32)
    y = jax.random.normal(ky, (K, N), dtype=jnp.float32)

    out = cat_mm(x, y)
    jax.block_until_ready(out)

    ref = cat_mm_ref(x, y)
    assert out.shape == (M, NUM_REPEATS * N)
    assert jnp.allclose(out, ref, atol=1e-5, rtol=1e-5)
    print("KERNEL_OK")
</pallas_src>

<mosaic_0001>
module attributes {stable_mosaic.version = 11 : i64} {
  func.func @cat_mm_kernel(%arg0: memref<8x32xf32, #tpu.memory_space<vmem>>, %arg1: memref<32x16xf32, #tpu.memory_space<vmem>>, %arg2: memref<8x128xf32, #tpu.memory_space<vmem>>) attributes {dimension_semantics = [], scalar_prefetch = 0 : i64, scratch_operands = 0 : i64, tpu.core_type = #tpu.core_type<tc>} {
    %c0 = arith.constant 0 : index
    %c0_0 = arith.constant 0 : index
    %0 = vector.load %arg0[%c0, %c0_0] : memref<8x32xf32, #tpu.memory_space<vmem>>, vector<8x32xf32>
    %c0_1 = arith.constant 0 : index
    %c0_2 = arith.constant 0 : index
    %1 = vector.load %arg1[%c0_1, %c0_2] : memref<32x16xf32, #tpu.memory_space<vmem>>, vector<32x16xf32>
    %cst = arith.constant dense<0.000000e+00> : vector<8x16xf32>
    %2 = tpu.matmul %0, %1, %cst {dimension_numbers = #tpu.dot_dimension_numbers<[1], [0], [0], [1], [0, 0, 1, 1], [], []>} : vector<8x32xf32>, vector<32x16xf32>, vector<8x16xf32> -> vector<8x16xf32>
    %3 = tpu.concatenate %2, %2, %2, %2, %2, %2, %2, %2 in 1 : vector<8x16xf32>, vector<8x16xf32>, vector<8x16xf32>, vector<8x16xf32>, vector<8x16xf32>, vector<8x16xf32>, vector<8x16xf32>, vector<8x16xf32> -> vector<8x128xf32>
    %c0_3 = arith.constant 0 : index
    %c0_4 = arith.constant 0 : index
    %4 = vector.load %arg2[%c0_3, %c0_4] : memref<8x128xf32, #tpu.memory_space<vmem>>, vector<8x128xf32>
    tpu.vector_store %arg2[%c0_3, %c0_4], %3 {strides = array<i32>} : memref<8x128xf32, #tpu.memory_space<vmem>>, vector<8x128xf32>,
    return
  }
}

</mosaic_0001>

<llo_original>
// kernel: tpu_custom_call.1
$region0: #{tpu_custom_call.1}
  #allocation0 [shape = 'u32[]', space=smem, size = 0x4, offset = 0x4, fixed_abs, tag = 'smem constant byte address 0x4 - core index']
  #allocation1 [shape = 'u32[144,128]{1,0:T(1,128)}', space=vmem, size = 0x12000, scoped, tag = 'internal scratch']
  %s0 = inlined_call_operand.vmem [shape: f32[8,32], index: 0, kind: input, shape index: {}]
  %s1 = inlined_call_operand.vmem [shape: f32[32,16], index: 1, kind: input, shape index: {}]
  %s2 = inlined_call_operand.hbm [shape: f32[8,128], index: 2, kind: output, shape index: {}]
  %s3 = sld [smem:[#allocation0]]
  $region18: #{tpu_custom_call.1} parent=0
    _
  %s5 = ssub.s32 1, %s3
  %s6 = scalar_select 0, %s5, %s3
  $region1: #{tpu_custom_call.1} parent=0
    #allocation2 [shape = 'u8[4096]{0}', space=vmem, size = 0x1000, scoped, tag = 'output window, operand 0, single buffered']
    #allocation3 [shape = 's32[1]{0}', space=sflag, size = 0x4, scoped, tag = 'scoped memory for tpu_custom_call.1']
    %7 = vsyncpa [#allocation3], 0
    // Predicated region
    $region2: #{tpu_custom_call.1} parent=1 // pred_check
      _
    $region3: #{tpu_custom_call.1} parent=1 // pred_check_branch
      %9 = sbr.rel (0) target = $region5
    $region4: #{tpu_custom_call.1} parent=1 // pred_region
      _
    $region5: #{tpu_custom_call.1} parent=1 // pred_fallthru
      _
    // Predicated region
    $region6: #{tpu_custom_call.1} parent=1 // pred_check
      _
    $region7: #{tpu_custom_call.1} parent=1 // pred_check_branch
      %11 = sbr.rel (0) target = $region9
    $region8: #{tpu_custom_call.1} parent=1 // pred_region
      _
    $region9: #{tpu_custom_call.1} parent=1 // pred_fallthru
      _
    %v12 = vld [vmem:[%s0] sm:$0xff]
    %v13 = vld [vmem:[%s1] sm:$0xff]
    %v14 = vld [vmem:[%s1 + $0x8] sm:$0xff]
    %v15 = vld [vmem:[%s1 + $0x10] sm:$0xff]
    %v16 = vld [vmem:[%s1 + $0x18] sm:$0xff]
    %vm17 = vcmask 261120
    %v19 = vsel %vm17, %v12, 0
    %21 = vmatprep.subr.mxu0 0.0
    %22 = vmatpush1.msra.mxu0 0.0
    %23 = vmatprep.subr.mxu0 0.0
    %24 = vmatpush1.msra.mxu0 0.0
    %25 = vmatprep.subr.mxu0 0.0
    %26 = vmatpush1.msra.mxu0 0.0
    %27 = vmatprep.subr.mxu0 0.0
    %28 = vmatpush1.msra.mxu0 0.0
    %29 = vmatprep.subr.mxu0 0.0
    %30 = vmatpush1.msra.mxu0 0.0
    %31 = vmatprep.subr.mxu0 0.0
    %32 = vmatpush1.msra.mxu0 0.0
    %33 = vmatprep.subr.mxu0 0.0
    %34 = vmatpush1.msra.mxu0 0.0
    %35 = vmatprep.subr.mxu0 0.0
    %36 = vmatpush1.msra.mxu0 0.0
    %37 = vmatprep.subr.mxu0 0.0
    %38 = vmatpush1.msra.mxu0 0.0
    %39 = vmatprep.subr.mxu0 0.0
    %40 = vmatpush1.msra.mxu0 0.0
    %41 = vmatprep.subr.mxu0 0.0
    %42 = vmatpush1.msra.mxu0 0.0
    %43 = vmatprep.subr.mxu0 0.0
    %44 = vmatpush1.msra.mxu0 0.0
    %45 = vmatprep.subr.mxu0 0.0
    %46 = vmatpush1.msra.mxu0 %v16
    %47 = vmatprep.subr.mxu0 0.0
    %48 = vmatpush1.msra.mxu0 %v15
    %49 = vmatprep.subr.mxu0 0.0
    %50 = vmatpush1.msra.mxu0 %v14
    %51 = vmatprep.subr.mxu0 0.0
    %52 = vmatpush1.msra.mxu0 %v13
    %53 = vmatprep.subr.mxu0 0.0
    %54 = vmatpush2.msra.mxu0 0.0
    %55 = vmatprep.subr.mxu0 0.0
    %56 = vmatpush2.msra.mxu0 0.0
    %57 = vmatprep.subr.mxu0 0.0
    %58 = vmatpush2.msra.mxu0 0.0
    %59 = vmatprep.subr.mxu0 0.0
    %60 = vmatpush2.msra.mxu0 0.0
    %61 = vmatprep.subr.mxu0 0.0
    %62 = vmatpush2.msra.mxu0 0.0
    %63 = vmatprep.subr.mxu0 0.0
    %64 = vmatpush2.msra.mxu0 0.0
    %65 = vmatprep.subr.mxu0 0.0
    %66 = vmatpush2.msra.mxu0 0.0
    %67 = vmatprep.subr.mxu0 0.0
    %68 = vmatpush2.msra.mxu0 0.0
    %69 = vmatprep.subr.mxu0 0.0
    %70 = vmatpush2.msra.mxu0 0.0
    %71 = vmatprep.subr.mxu0 0.0
    %72 = vmatpush2.msra.mxu0 0.0
    %73 = vmatprep.subr.mxu0 0.0
    %74 = vmatpush2.msra.mxu0 0.0
    %75 = vmatprep.subr.mxu0 0.0
    %76 = vmatpush2.msra.mxu0 0.0
    %77 = vmatprep.subr.mxu0 0.0
    %78 = vmatpush2.msra.mxu0 0.0
    %79 = vmatprep.subr.mxu0 0.0
    %80 = vmatpush2.msra.mxu0 0.0
    %81 = vmatprep.subr.mxu0 0.0
    %82 = vmatpush2.msra.mxu0 0.0
    %83 = vmatprep.subr.mxu0 0.0
    %84 = vmatpush2.msra.mxu0 0.0
    %85 = vmatprep.mubr.f32.mxu0 0.0
    %86 = vmatmul.mubr.f32.gmra.mxu0 %v19
    %v87 = vpop.f32.mrf.mxu0
    %v88 = vadd.f32 0.0, %v87
    %v89 = vpop.f32.mrf.mxu0
    %90 = vdwg.mxu0
    %92 = vrot.lane.b32.xlu0 %v88, 16
    %v93 = vpop.permute.xlu0 %92
    %95 = vrot.lane.b32.xlu0 %v88, 32
    %v96 = vpop.permute.xlu0 %95
    %98 = vrot.lane.b32.xlu0 %v88, 48
    %v99 = vpop.permute.xlu0 %98
    %101 = vrot.lane.b32.xlu0 %v88, 64
    %v102 = vpop.permute.xlu0 %101
    %104 = vrot.lane.b32.xlu0 %v88, 80
    %v105 = vpop.permute.xlu0 %104
    %107 = vrot.lane.b32.xlu0 %v88, 96
    %v108 = vpop.permute.xlu0 %107
    %110 = vrot.lane.b32.xlu0 %v88, 112
    %v111 = vpop.permute.xlu0 %110
    %vm113 = vcmask 130048
    %v114 = vsel %vm113, %v88, %v93
    %v115 = vsel %vm17, %v114, %v96
    %vm116 = vcmask 392192
    %v117 = vsel %vm116, %v115, %v99
    %vm118 = vcmask 523264
    %v119 = vsel %vm118, %v117, %v102
    %vm120 = vcmask 654336
    %v121 = vsel %vm120, %v119, %v105
    %vm122 = vcmask 785408
    %v123 = vsel %vm122, %v121, %v108
    %vm124 = vcmask 916480
    %v125 = vsel %vm124, %v123, %v111
    %126 = vst [vmem:[#allocation2] sm:$0xff] %v125
    // Predicated region
    $region10: #{tpu_custom_call.1} parent=1 // pred_check
      _
    $region11: #{tpu_custom_call.1} parent=1 // pred_check_branch
      %128 = sbr.rel (0) target = $region13
    $region12: #{tpu_custom_call.1} parent=1 // pred_region
      %s130 = ssub.s32 128, 128
      %131 = vsyncadd [#allocation3], %s130
      %s133 = sshll.u32 [#allocation2], 4
      %s134 = int_to_ptr.vmem [resolvable:$true] %s133
      %136 = dma.vmem_to_hbm [thread:$0]  %s134, 128, %s2, [#allocation3]
    $region13: #{tpu_custom_call.1} parent=1 // pred_fallthru
      _
    // Predicated region
    $region14: #{tpu_custom_call.1} parent=1 // pred_check
      _
    $region15: #{tpu_custom_call.1} parent=1 // pred_check_branch
      %138 = sbr.rel (0) target = $region17
    $region16: #{tpu_custom_call.1} parent=1 // pred_region
      %139 = dma.done [#allocation3], 128
    $region17: #{tpu_custom_call.1} parent=1 // pred_fallthru
      _
    %140 = vsyncpa [#allocation3], 1

</llo_original>
